<compile_context>
chip_gen: v7x
topology: tpu7x:2x2x1
jax: 0.10.0
libtpu: 0.0.40
codegen_flags: <defaults>
</compile_context>

<pallas_src>
import jax
import jax.numpy as jnp
from jax.experimental import pallas as pl
from jax.experimental.pallas import tpu as pltpu


# ----------------------------- fused kernel ---------------------------------
def _make_kernel(use_noise, use_pixel_norm, use_instance_norm, use_style,
                 negative_slope, eps):
    def kernel(x_ref, noise_ref, nw_ref, bias_ref, style_ref, o_ref):
        # Blocks (per batch element b):
        #   x_ref     : (1, C, HW)   activations (lane axis = HW), any float dtype
        #   noise_ref : (1, 1, HW)   spatial noise (learned buffer or fresh draw)
        #   nw_ref    : (C, 1)       NoiseBlock.weight
        #   bias_ref  : (C, 1)       LearnableBias.bias
        #   style_ref : (1, 2C, 1)   precomputed StyleMod dense output for sample b
        #   o_ref     : (1, C, HW)
        x = x_ref[0].astype(jnp.float32)                 # (C, HW), compute in f32
        C = x.shape[0]
        hw = x.shape[1]

        if use_noise:
            # (1, HW) * (C, 1) -> (C, HW)
            x = x + noise_ref[0].astype(jnp.float32) * nw_ref[...]

        x = x + bias_ref[...]                            # per-channel bias
        # LeakyReLU(0.2): max(x, 0.2*x) is exact for 0 < slope < 1 (2 VALU ops)
        x = jnp.maximum(x, negative_slope * x)

        if use_pixel_norm:  # module default: False
            x = x * jax.lax.rsqrt(jnp.mean(x * x, axis=0, keepdims=True) + eps)

        if use_instance_norm:
            # one-pass stats over the spatial dim: var = E[x^2] - mean^2,
            # clamped >= 0 so f32 cancellation can never make rsqrt go NaN.
            inv_hw = 1.0 / hw
            mean = jnp.sum(x, axis=1, keepdims=True) * inv_hw         # (C, 1)
            mean_sq = jnp.sum(x * x, axis=1, keepdims=True) * inv_hw  # (C, 1)
            var = jnp.maximum(mean_sq - mean * mean, 0.0)
            x = (x - mean) * jax.lax.rsqrt(var + eps)

        if use_style:
            style = style_ref[0]                 # (2C, 1) column, broadcasts on lanes
            s0 = style[:C, :]                    # scale
            s1 = style[C:, :]                    # shift
            x = x * (s0 + 1.0) + s1

        o_ref[0] = x.astype(o_ref.dtype)

    return kernel


# ----------------------------- wrapper ---------------------------------------
def layer_epilogue(x, dlatent, params, *, noise=None, randomize_noise=True,
                   rng_key=None, use_noise=True, use_pixel_norm=False,
                   use_instance_norm=True, use_style=True,
                   negative_slope=0.2, eps=1e-8):
    """x: (B, C, H, W) NCHW (torch layout); dlatent: (B, D). Returns (B, C, H, W).

    Activations may be f32 or bf16; parameters / stats math stay f32.
    """
    B, C, H, W = x.shape
    HW = H * W

    if noise is None:
        if use_noise and randomize_noise:
            if rng_key is None:
                raise ValueError("rng_key required for randomize_noise=True")
            # TODO(synk): noise is drawn with jax.random in the wrapper (same
            # semantics as torch.randn but a different RNG stream); could be
            # moved fully in-kernel with pltpu.prng_seed / stateful_normal to
            # drop the extra HBM read stream.
            noise = jax.random.normal(rng_key, (B, 1, H, W), jnp.float32)
        else:
            noise = params["noise"]                    # learned (1, 1, H, W) buffer

    # StyleMod Linear hoisted out of the kernel: tiny (B,D)@(D,2C) matmul done
    # once by XLA; kernel only streams a (2C, 1) column per sample.
    if use_style:
        style = (dlatent.astype(jnp.float32) @ params["style_w"].T
                 + params["style_b"][:, 0])                         # (B, 2C)
        style3 = style.reshape(B, 2 * C, 1)
    else:
        style3 = jnp.zeros((B, 2 * C, 1), jnp.float32)

    # Free (trailing-dim) reshapes only — no transposes / pads materialized.
    x3 = x.reshape(B, C, HW)
    noise3 = noise.reshape(noise.shape[0], 1, HW).astype(jnp.float32)
    n_batched = noise3.shape[0] == B
    noise_map = (lambda b: (b, 0, 0)) if n_batched else (lambda b: (0, 0, 0))

    kernel = _make_kernel(use_noise, use_pixel_norm, use_instance_norm,
                          use_style, negative_slope, eps)

    # Explicit scoped-VMEM budget: double-buffered x in/out + noise + padded
    # parameter columns, with generous headroom, clamped to the safe defaults.
    itemsize = jnp.dtype(x.dtype).itemsize
    tile_bytes = C * HW * itemsize
    est = (2 * 2 * tile_bytes            # x in + out, double-buffered
           + 2 * HW * 4                  # noise block, double-buffered
           + 2 * 4 * C * 128 * 4)        # (C,1)/(2C,1) columns lane-padded, x2 buffers
    vmem_limit = int(min(max(2 * est, 16 << 20), 32 << 20))

    out3 = pl.pallas_call(
        kernel,
        out_shape=jax.ShapeDtypeStruct((B, C, HW), x.dtype),
        grid=(B,),
        in_specs=[
            pl.BlockSpec((1, C, HW), lambda b: (b, 0, 0)),      # x
            pl.BlockSpec((1, 1, HW), noise_map),                # noise
            pl.BlockSpec((C, 1), lambda b: (0, 0)),             # noise weight
            pl.BlockSpec((C, 1), lambda b: (0, 0)),             # bias
            pl.BlockSpec((1, 2 * C, 1), lambda b: (b, 0, 0)),   # per-sample style
        ],
        out_specs=pl.BlockSpec((1, C, HW), lambda b: (b, 0, 0)),
        compiler_params=pltpu.CompilerParams(
            # v7x: independent samples can shard across the two TensorCores.
            # TODO(synk): verify megacore split in the bundle dump; switch to
            # pltpu.CORE_PARALLEL / pl.core_map if the axis is not sharded.
            dimension_semantics=("parallel",),
            vmem_limit_bytes=vmem_limit),
    )(x3, noise3, params["noise_w"], params["bias"], style3)

    return out3.reshape(B, C, H, W)


# ----------------------------- pure-JAX reference ----------------------------
def layer_epilogue_ref(x, dlatent, params, noise, *, use_noise=True,
                       use_pixel_norm=False, use_instance_norm=True,
                       use_style=True, negative_slope=0.2, eps=1e-8):
    x = x.astype(jnp.float32)
    if use_noise:
        x = x + noise * params["noise_w"].reshape(1, -1, 1, 1)
    x = x + params["bias"].reshape(1, -1, 1, 1)
    x = jnp.where(x >= 0.0, x, negative_slope * x)
    if use_pixel_norm:
        x = x * jax.lax.rsqrt(jnp.mean(x * x, axis=1, keepdims=True) + eps)
    if use_instance_norm:
        x = x - jnp.mean(x, axis=(2, 3), keepdims=True)
        x = x * jax.lax.rsqrt(jnp.mean(x * x, axis=(2, 3), keepdims=True) + eps)
    if use_style:
        style = dlatent @ params["style_w"].T + params["style_b"][:, 0]
        B, C = x.shape[:2]
        s = style.reshape(B, 2, C, 1, 1)
        x = x * (s[:, 0] + 1.0) + s[:, 1]
    return x


# ----------------------------- params ----------------------------------------
def init_params(key, C, D, H, W):
    # Shapes mirror the torch module; random (non-zero) values so every term of
    # the forward is actually exercised (torch inits noise_w / bias to zeros).
    k1, k2, k3, k4, k5 = jax.random.split(key, 5)
    return dict(
        noise=jax.random.normal(k1, (1, 1, H, W), jnp.float32),         # NoiseBlock.noise
        noise_w=jax.random.normal(k2, (C, 1), jnp.float32) * 0.1,       # NoiseBlock.weight
        bias=jax.random.normal(k3, (C, 1), jnp.float32) * 0.1,          # LearnableBias.bias
        style_w=jax.random.normal(k4, (2 * C, D), jnp.float32) * (D ** -0.5),  # Linear.weight (2C, D)
        style_b=jax.random.normal(k5, (2 * C, 1), jnp.float32) * 0.1,          # Linear.bias
    )


# ----------------------------- main -------------------------------------------
if __name__ == "__main__":
    B, C, H, W, D = 2, 128, 16, 16, 128
    key = jax.random.PRNGKey(0)
    kx, kd, kp, kn = jax.random.split(key, 4)

    x = jax.random.normal(kx, (B, C, H, W), jnp.float32)
    dlatent = jax.random.normal(kd, (B, D), jnp.float32)
    params = init_params(kp, C, D, H, W)
    # randomize_noise=True path: fresh per-sample Gaussian noise (fixed key here
    # so the run is deterministic and comparable with the reference).
    noise = jax.random.normal(kn, (B, 1, H, W), jnp.float32)

    ref = layer_epilogue_ref(x, dlatent, params, noise)

    # ---- f32 activation storage: strict check -------------------------------
    fwd = jax.jit(layer_epilogue)
    out = jax.block_until_ready(fwd(x, dlatent, params, noise=noise))
    assert out.shape == (B, C, H, W) and out.dtype == jnp.float32
    assert bool(jnp.allclose(out, ref, atol=1e-4, rtol=1e-4)), \
        float(jnp.max(jnp.abs(out - ref)))

    # ---- bf16 activation storage (HBM-bound lever on v6e/v7x): loose check ---
    out_bf = jax.block_until_ready(fwd(x.astype(jnp.bfloat16), dlatent, params,
                                       noise=noise))
    out_bf_f32 = out_bf.astype(jnp.float32)
    assert out_bf.dtype == jnp.bfloat16
    assert bool(jnp.all(jnp.isfinite(out_bf_f32)))
    assert float(jnp.max(jnp.abs(out_bf_f32 - ref))) < 0.25  # bf16 storage quantization

    print("KERNEL_OK")
</pallas_src>

<mosaic_0001>
module attributes {stable_mosaic.version = 11 : i64} {
  func.func @kernel(%arg0: i32, %arg1: memref<1x128x256xf32, #tpu.memory_space<vmem>>, %arg2: memref<1x1x256xf32, #tpu.memory_space<vmem>>, %arg3: memref<128x1xf32, #tpu.memory_space<vmem>>, %arg4: memref<128x1xf32, #tpu.memory_space<vmem>>, %arg5: memref<1x256x1xf32, #tpu.memory_space<vmem>>, %arg6: memref<1x128x256xf32, #tpu.memory_space<vmem>>) attributes {dimension_semantics = [#tpu.dimension_semantics<parallel>], iteration_bounds = array<i64: 2>, scalar_prefetch = 0 : i64, scratch_operands = 0 : i64, tpu.core_type = #tpu.core_type<tc>, window_params = [{transform_indices = @transform_0, window_bounds = array<i64: 1, 128, 256>}, {transform_indices = @transform_1, window_bounds = array<i64: 1, 1, 256>}, {pipeline_mode = #tpu.pipeline_mode<synchronous>, transform_indices = @transform_2, window_bounds = array<i64: 128, 1>}, {pipeline_mode = #tpu.pipeline_mode<synchronous>, transform_indices = @transform_3, window_bounds = array<i64: 128, 1>}, {transform_indices = @transform_4, window_bounds = array<i64: 1, 256, 1>}, {transform_indices = @transform_5, window_bounds = array<i64: 1, 128, 256>}]} {
    %c0 = arith.constant 0 : index
    %c0_0 = arith.constant 0 : index
    %c0_1 = arith.constant 0 : index
    %0 = vector.load %arg1[%c0, %c0_0, %c0_1] : memref<1x128x256xf32, #tpu.memory_space<vmem>>, vector<1x128x256xf32>
    %1 = vector.shape_cast %0 : vector<1x128x256xf32> to vector<128x256xf32>
    %c0_2 = arith.constant 0 : index
    %c0_3 = arith.constant 0 : index
    %c0_4 = arith.constant 0 : index
    %2 = vector.load %arg2[%c0_2, %c0_3, %c0_4] : memref<1x1x256xf32, #tpu.memory_space<vmem>>, vector<1x1x256xf32>
    %3 = vector.shape_cast %2 : vector<1x1x256xf32> to vector<1x256xf32>
    %c0_5 = arith.constant 0 : index
    %c0_6 = arith.constant 0 : index
    %4 = vector.load %arg3[%c0_5, %c0_6] : memref<128x1xf32, #tpu.memory_space<vmem>>, vector<128x1xf32>
    %5 = vector.broadcast %3 : vector<1x256xf32> to vector<128x256xf32>
    %6 = vector.broadcast %4 : vector<128x1xf32> to vector<128x256xf32>
    %7 = arith.mulf %5, %6 : vector<128x256xf32>
    %8 = arith.addf %1, %7 : vector<128x256xf32>
    %c0_7 = arith.constant 0 : index
    %c0_8 = arith.constant 0 : index
    %9 = vector.load %arg4[%c0_7, %c0_8] : memref<128x1xf32, #tpu.memory_space<vmem>>, vector<128x1xf32>
    %10 = vector.broadcast %9 : vector<128x1xf32> to vector<128x256xf32>
    %11 = arith.addf %8, %10 : vector<128x256xf32>
    %cst = arith.constant 2.000000e-01 : f32
    %12 = vector.broadcast %cst : f32 to vector<128x256xf32>
    %13 = arith.mulf %12, %11 : vector<128x256xf32>
    %14 = arith.maximumf %11, %13 : vector<128x256xf32>
    %cst_9 = arith.constant dense<0.000000e+00> : vector<128xf32>
    %15 = vector.multi_reduction <add>, %14, %cst_9 [1] : vector<128x256xf32> to vector<128xf32>
    %16 = vector.shape_cast %15 : vector<128xf32> to vector<128x1xf32>
    %cst_10 = arith.constant 3.906250e-03 : f32
    %17 = vector.broadcast %cst_10 : f32 to vector<128x1xf32>
    %18 = arith.mulf %16, %17 : vector<128x1xf32>
    %19 = arith.mulf %14, %14 : vector<128x256xf32>
    %cst_11 = arith.constant dense<0.000000e+00> : vector<128xf32>
    %20 = vector.multi_reduction <add>, %19, %cst_11 [1] : vector<128x256xf32> to vector<128xf32>
    %21 = vector.shape_cast %20 : vector<128xf32> to vector<128x1xf32>
    %cst_12 = arith.constant 3.906250e-03 : f32
    %22 = vector.broadcast %cst_12 : f32 to vector<128x1xf32>
    %23 = arith.mulf %21, %22 : vector<128x1xf32>
    %24 = arith.mulf %18, %18 : vector<128x1xf32>
    %25 = arith.subf %23, %24 : vector<128x1xf32>
    %cst_13 = arith.constant 0.000000e+00 : f32
    %26 = vector.broadcast %cst_13 : f32 to vector<128x1xf32>
    %27 = arith.maximumf %25, %26 : vector<128x1xf32>
    %28 = vector.broadcast %18 : vector<128x1xf32> to vector<128x256xf32>
    %29 = arith.subf %14, %28 : vector<128x256xf32>
    %cst_14 = arith.constant 9.99999993E-9 : f32
    %30 = vector.broadcast %cst_14 : f32 to vector<128x1xf32>
    %31 = arith.addf %27, %30 : vector<128x1xf32>
    %32 = math.rsqrt %31 : vector<128x1xf32>
    %33 = vector.broadcast %32 : vector<128x1xf32> to vector<128x256xf32>
    %34 = arith.mulf %29, %33 : vector<128x256xf32>
    %c0_15 = arith.constant 0 : index
    %c0_16 = arith.constant 0 : index
    %c0_17 = arith.constant 0 : index
    %35 = vector.load %arg5[%c0_15, %c0_16, %c0_17] : memref<1x256x1xf32, #tpu.memory_space<vmem>>, vector<1x256x1xf32>
    %36 = vector.shape_cast %35 : vector<1x256x1xf32> to vector<256x1xf32>
    %37 = vector.extract_strided_slice %36 {offsets = [0, 0], sizes = [128, 1], strides = [1, 1]} : vector<256x1xf32> to vector<128x1xf32>
    %38 = vector.extract_strided_slice %36 {offsets = [128, 0], sizes = [128, 1], strides = [1, 1]} : vector<256x1xf32> to vector<128x1xf32>
    %cst_18 = arith.constant 1.000000e+00 : f32
    %39 = vector.broadcast %cst_18 : f32 to vector<128x1xf32>
    %40 = arith.addf %37, %39 : vector<128x1xf32>
    %41 = vector.broadcast %40 : vector<128x1xf32> to vector<128x256xf32>
    %42 = arith.mulf %34, %41 : vector<128x256xf32>
    %43 = vector.broadcast %38 : vector<128x1xf32> to vector<128x256xf32>
    %44 = arith.addf %42, %43 : vector<128x256xf32>
    %c0_19 = arith.constant 0 : index
    %c0_20 = arith.constant 0 : index
    %c0_21 = arith.constant 0 : index
    %45 = vector.load %arg6[%c0_19, %c0_20, %c0_21] : memref<1x128x256xf32, #tpu.memory_space<vmem>>, vector<1x128x256xf32>
    %46 = vector.shape_cast %45 : vector<1x128x256xf32> to vector<128x256xf32>
    %47 = vector.shape_cast %44 : vector<128x256xf32> to vector<1x128x256xf32>
    tpu.vector_store %arg6[%c0_19, %c0_20, %c0_21], %47 {strides = array<i32>} : memref<1x128x256xf32, #tpu.memory_space<vmem>>, vector<1x128x256xf32>,
    return
  }
  func.func @transform_0(%arg0: i32) -> (i32, i32, i32) {
    %c0_i32 = arith.constant 0 : i32
    %c0_i32_0 = arith.constant 0 : i32
    %c0_i32_1 = arith.constant 0 : i32
    return %arg0, %c0_i32, %c0_i32_0 : i32, i32, i32
  }
  func.func @transform_1(%arg0: i32) -> (i32, i32, i32) {
    %c0_i32 = arith.constant 0 : i32
    %c0_i32_0 = arith.constant 0 : i32
    %c0_i32_1 = arith.constant 0 : i32
    return %arg0, %c0_i32, %c0_i32_0 : i32, i32, i32
  }
  func.func @transform_2(%arg0: i32) -> (i32, i32) {
    %c0_i32 = arith.constant 0 : i32
    %c0_i32_0 = arith.constant 0 : i32
    %c0_i32_1 = arith.constant 0 : i32
    return %c0_i32, %c0_i32_0 : i32, i32
  }
  func.func @transform_3(%arg0: i32) -> (i32, i32) {
    %c0_i32 = arith.constant 0 : i32
    %c0_i32_0 = arith.constant 0 : i32
    %c0_i32_1 = arith.constant 0 : i32
    return %c0_i32, %c0_i32_0 : i32, i32
  }
  func.func @transform_4(%arg0: i32) -> (i32, i32, i32) {
    %c0_i32 = arith.constant 0 : i32
    %c0_i32_0 = arith.constant 0 : i32
    %c0_i32_1 = arith.constant 0 : i32
    return %arg0, %c0_i32, %c0_i32_0 : i32, i32, i32
  }
  func.func @transform_5(%arg0: i32) -> (i32, i32, i32) {
    %c0_i32 = arith.constant 0 : i32
    %c0_i32_0 = arith.constant 0 : i32
    %c0_i32_1 = arith.constant 0 : i32
    return %arg0, %c0_i32, %c0_i32_0 : i32, i32, i32
  }
}

</mosaic_0001>

<llo_original>
// kernel: layer_epilogue.1
$region0: #{layer_epilogue.1}
  #allocation0 [shape = 'u32[]', space=smem, size = 0x4, offset = 0x4, fixed_abs, tag = 'smem constant byte address 0x4 - core index']
  #allocation1 [shape = 'u32[144,128]{1,0:T(1,128)}', space=vmem, size = 0x12000, scoped, tag = 'internal scratch']
  %s0 = inlined_call_operand.vmem [shape: f32[2,128,256], index: 0, kind: input, shape index: {}]
  %s1 = inlined_call_operand.vmem [shape: f32[2,1,256], index: 1, kind: input, shape index: {}]
  %s2 = inlined_call_operand.vmem [shape: f32[128,1], index: 2, kind: input, shape index: {}]
  %s3 = inlined_call_operand.vmem [shape: f32[128,1], index: 3, kind: input, shape index: {}]
  %s4 = inlined_call_operand.vmem [shape: f32[2,256,1], index: 4, kind: input, shape index: {}]
  %s5 = inlined_call_operand.vmem [shape: f32[2,128,256], index: 5, kind: output, shape index: {}]
  %s6 = sld [smem:[#allocation0]]
  $region53: #{layer_epilogue.1} parent=0
    _
  %s8 = ssub.s32 1, %s6
  %s9 = scalar_select 0, %s8, %s6
  loop: start=0, step=1, limit=4
  $region2: #{layer_epilogue.1} parent=0 // loop_pre_header
    _
  $region3: #{layer_epilogue.1} parent=0 // loop_header
    %s11 = sphi 0, %s15
    %p12 = scmp.ge.s32.totalorder %s11, 4
    %s21 = sphi 0, %s23
    %s24 = sphi 0, %s21
    %s25 = sphi 0, %s24
    %s41 = sphi 0, %s25
    %s47 = sphi 0, %s49
    %s50 = sphi 0, %s47
    %s51 = sphi 0, %s50
    %s67 = sphi 0, %s51
    %s71 = sphi 0, %s71
    %s73 = sphi 0, %s71
    %s74 = sphi 0, %s73
    %s88 = sphi 0, %s74
    %s92 = sphi 0, %s92
    %s94 = sphi 0, %s92
    %s95 = sphi 0, %s94
    %s109 = sphi 0, %s95
    %s115 = sphi 0, %s117
    %s118 = sphi 0, %s115
    %s119 = sphi 0, %s118
    %s135 = sphi 0, %s119
    %s141 = sphi 0, %s143
    %s144 = sphi 0, %s141
    %s145 = sphi 0, %s144
    %s161 = sphi 0, %s145
  $region4: #{layer_epilogue.1} parent=0 // loop_header_branch
    %14 = sbr.rel (%p12) target = $region8
  $region5: #{layer_epilogue.1} parent=0 // loop_body
    %s16 = ssub.s32 %s11, 1
    %s17 = ssub.s32 %s11, 2
    %s18 = sadd.s32 %s11, 1
    %s19 = ssub.s32 %s11, %s18
    %p20 = scmp.eq.s32.totalorder %s19, 0
    %s22 = sadd.s32 %s21, 1
    %s23 = scalar_select %p20, %s21, %s22
    %p26 = pneg %p20
    %p27 = scmp.eq.s32.totalorder %s11, 1
    %p28 = por %p26, %p27
    %p29 = scmp.ne.s32.totalorder %s21, %s24
    %p30 = scmp.eq.s32.totalorder %s11, 0
    %p31 = por %p29, %p30
    %p32 = scmp.ne.s32.totalorder %s21, %s24
    %p33 = scmp.eq.s32.totalorder %s16, 1
    %p34 = por %p32, %p33
    %p35 = scmp.ne.s32.totalorder %s24, %s25
    %p36 = scmp.eq.s32.totalorder %s16, 0
    %p37 = por %p35, %p36
    %p38 = scmp.ne.s32.totalorder %s24, %s25
    %p39 = scmp.eq.s32.totalorder %s17, 1
    %p40 = por %p38, %p39
    %p42 = scmp.ne.s32.totalorder %s25, %s41
    %p43 = scmp.eq.s32.totalorder %s17, 0
    %p44 = por %p42, %p43
    %s45 = ssub.s32 %s11, %s18
    %p46 = scmp.eq.s32.totalorder %s45, 0
    %s48 = sadd.s32 %s47, 1
    %s49 = scalar_select %p46, %s47, %s48
    %p52 = pneg %p46
    %p53 = scmp.eq.s32.totalorder %s11, 1
    %p54 = por %p52, %p53
    %p55 = scmp.ne.s32.totalorder %s47, %s50
    %p56 = scmp.eq.s32.totalorder %s11, 0
    %p57 = por %p55, %p56
    %p58 = scmp.ne.s32.totalorder %s47, %s50
    %p59 = scmp.eq.s32.totalorder %s16, 1
    %p60 = por %p58, %p59
    %p61 = scmp.ne.s32.totalorder %s50, %s51
    %p62 = scmp.eq.s32.totalorder %s16, 0
    %p63 = por %p61, %p62
    %p64 = scmp.ne.s32.totalorder %s50, %s51
    %p65 = scmp.eq.s32.totalorder %s17, 1
    %p66 = por %p64, %p65
    %p68 = scmp.ne.s32.totalorder %s51, %s67
    %p69 = scmp.eq.s32.totalorder %s17, 0
    %p70 = por %p68, %p69
    %s72 = sadd.s32 %s71, 1
    %p75 = scmp.eq.s32.totalorder %s11, 1
    %p76 = scmp.ne.s32.totalorder %s71, %s73
    %p77 = scmp.eq.s32.totalorder %s11, 0
    %p78 = por %p76, %p77
    %p79 = scmp.ne.s32.totalorder %s71, %s73
    %p80 = scmp.eq.s32.totalorder %s16, 1
    %p81 = por %p79, %p80
    %p82 = scmp.ne.s32.totalorder %s73, %s74
    %p83 = scmp.eq.s32.totalorder %s16, 0
    %p84 = por %p82, %p83
    %p85 = scmp.ne.s32.totalorder %s73, %s74
    %p86 = scmp.eq.s32.totalorder %s17, 1
    %p87 = por %p85, %p86
    %p89 = scmp.ne.s32.totalorder %s74, %s88
    %p90 = scmp.eq.s32.totalorder %s17, 0
    %p91 = por %p89, %p90
    %s93 = sadd.s32 %s92, 1
    %p96 = scmp.eq.s32.totalorder %s11, 1
    %p97 = scmp.ne.s32.totalorder %s92, %s94
    %p98 = scmp.eq.s32.totalorder %s11, 0
    %p99 = por %p97, %p98
    %p100 = scmp.ne.s32.totalorder %s92, %s94
    %p101 = scmp.eq.s32.totalorder %s16, 1
    %p102 = por %p100, %p101
    %p103 = scmp.ne.s32.totalorder %s94, %s95
    %p104 = scmp.eq.s32.totalorder %s16, 0
    %p105 = por %p103, %p104
    %p106 = scmp.ne.s32.totalorder %s94, %s95
    %p107 = scmp.eq.s32.totalorder %s17, 1
    %p108 = por %p106, %p107
    %p110 = scmp.ne.s32.totalorder %s95, %s109
    %p111 = scmp.eq.s32.totalorder %s17, 0
    %p112 = por %p110, %p111
    %s113 = ssub.s32 %s11, %s18
    %p114 = scmp.eq.s32.totalorder %s113, 0
    %s116 = sadd.s32 %s115, 1
    %s117 = scalar_select %p114, %s115, %s116
    %p120 = pneg %p114
    %p121 = scmp.eq.s32.totalorder %s11, 1
    %p122 = por %p120, %p121
    %p123 = scmp.ne.s32.totalorder %s115, %s118
    %p124 = scmp.eq.s32.totalorder %s11, 0
    %p125 = por %p123, %p124
    %p126 = scmp.ne.s32.totalorder %s115, %s118
    %p127 = scmp.eq.s32.totalorder %s16, 1
    %p128 = por %p126, %p127
    %p129 = scmp.ne.s32.totalorder %s118, %s119
    %p130 = scmp.eq.s32.totalorder %s16, 0
    %p131 = por %p129, %p130
    %p132 = scmp.ne.s32.totalorder %s118, %s119
    %p133 = scmp.eq.s32.totalorder %s17, 1
    %p134 = por %p132, %p133
    %p136 = scmp.ne.s32.totalorder %s119, %s135
    %p137 = scmp.eq.s32.totalorder %s17, 0
    %p138 = por %p136, %p137
    %s139 = ssub.s32 %s11, %s18
    %p140 = scmp.eq.s32.totalorder %s139, 0
    %s142 = sadd.s32 %s141, 1
    %s143 = scalar_select %p140, %s141, %s142
    %p146 = pneg %p140
    %p147 = scmp.eq.s32.totalorder %s11, 1
    %p148 = por %p146, %p147
    %p149 = scmp.ne.s32.totalorder %s141, %s144
    %p150 = scmp.eq.s32.totalorder %s11, 0
    %p151 = por %p149, %p150
    %p152 = scmp.ne.s32.totalorder %s141, %s144
    %p153 = scmp.eq.s32.totalorder %s16, 1
    %p154 = por %p152, %p153
    %p155 = scmp.ne.s32.totalorder %s144, %s145
    %p156 = scmp.eq.s32.totalorder %s16, 0
    %p157 = por %p155, %p156
    %p158 = scmp.ne.s32.totalorder %s144, %s145
    %p159 = scmp.eq.s32.totalorder %s17, 1
    %p160 = por %p158, %p159
    %p162 = scmp.ne.s32.totalorder %s145, %s161
    %p163 = scmp.eq.s32.totalorder %s17, 0
    %p164 = por %p162, %p163
    %p165 = scmp.le.s32.totalorder 1, %s11
    %p166 = scmp.lt.s32.totalorder %s11, 3
    %p167 = pnand %p165, %p166
    %p168 = pneg %p167
    // Predicated region
    $region9: #{layer_epilogue.1} parent=5 // pred_check
      _
    $region10: #{layer_epilogue.1} parent=5 // pred_check_branch
      %170 = sbr.rel (%p167) target = $region12
    $region11: #{layer_epilogue.1} parent=5 // pred_region
      %s171 = ssub.s32 %s11, 1
      // Predicated region
      $region13: #{layer_epilogue.1} parent=11 // pred_check
        %p172 = pneg %p84
      $region14: #{layer_epilogue.1} parent=11 // pred_check_branch
        %174 = sbr.rel (%p172) target = $region16
      $region15: #{layer_epilogue.1} parent=11 // pred_region
        _
      $region16: #{layer_epilogue.1} parent=11 // pred_fallthru
        _
      // Predicated region
      $region17: #{layer_epilogue.1} parent=11 // pred_check
        %p175 = pneg %p105
      $region18: #{layer_epilogue.1} parent=11 // pred_check_branch
        %177 = sbr.rel (%p175) target = $region20
      $region19: #{layer_epilogue.1} parent=11 // pred_region
        _
      $region20: #{layer_epilogue.1} parent=11 // pred_fallthru
        _
    $region12: #{layer_epilogue.1} parent=5 // pred_fallthru
      _
    %p178 = scmp.lt.s32.totalorder %s11, 2
    // Predicated region
    $region21: #{layer_epilogue.1} parent=5 // pred_check
      %p179 = pneg %p178
    $region22: #{layer_epilogue.1} parent=5 // pred_check_branch
      %181 = sbr.rel (%p179) target = $region24
    $region23: #{layer_epilogue.1} parent=5 // pred_region
      // Predicated region
      $region25: #{layer_epilogue.1} parent=23 // pred_check
        %p182 = pneg %p31
      $region26: #{layer_epilogue.1} parent=23 // pred_check_branch
        %184 = sbr.rel (%p182) target = $region28
      $region27: #{layer_epilogue.1} parent=23 // pred_region
        %p185 = scmp.lt.s32.totalorder %s11, 1
        %s186 = scalar_select %p185, %s11, 1
        %s187 = smul.addr %s186, 32
        %s188 = smul.addr %s187, 8
        %s189 = scalar_lea.vmem %s0, %s188
      $region28: #{layer_epilogue.1} parent=23 // pred_fallthru
        _
      // Predicated region
      $region29: #{layer_epilogue.1} parent=23 // pred_check
        %p190 = pneg %p57
      $region30: #{layer_epilogue.1} parent=23 // pred_check_branch
        %192 = sbr.rel (%p190) target = $region32
      $region31: #{layer_epilogue.1} parent=23 // pred_region
        %p193 = scmp.lt.s32.totalorder %s11, 1
        %s194 = scalar_select %p193, %s11, 1
        %s195 = smul.addr %s194, 2
        %s196 = scalar_lea.vmem %s1, %s195
      $region32: #{layer_epilogue.1} parent=23 // pred_fallthru
        _
      // Predicated region
      $region33: #{layer_epilogue.1} parent=23 // pred_check
        %p197 = pneg %p125
      $region34: #{layer_epilogue.1} parent=23 // pred_check_branch
        %199 = sbr.rel (%p197) target = $region36
      $region35: #{layer_epilogue.1} parent=23 // pred_region
        %p200 = scmp.lt.s32.totalorder %s11, 1
        %s201 = scalar_select %p200, %s11, 1
        %s202 = smul.addr %s201, 32
        %s203 = smul.addr %s202, 8
        %s204 = scalar_lea.vmem %s4, %s203
      $region36: #{layer_epilogue.1} parent=23 // pred_fallthru
        _
    $region24: #{layer_epilogue.1} parent=5 // pred_fallthru
      _
    %p205 = scmp.le.s32.totalorder 1, %s11
    %p206 = scmp.lt.s32.totalorder %s11, 3
    %p207 = pnand %p205, %p206
    %p208 = pneg %p207
    // Predicated region
    $region37: #{layer_epilogue.1} parent=5 // pred_check
      _
    $region38: #{layer_epilogue.1} parent=5 // pred_check_branch
      %210 = sbr.rel (%p207) target = $region40
    $region39: #{layer_epilogue.1} parent=5 // pred_region
      %s211 = ssub.s32 %s11, 1
      %p212 = scmp.lt.s32.totalorder %s16, 1
      %s213 = scalar_select %p212, %s16, 1
      %s214 = smul.addr %s213, 32
      %s215 = smul.addr %s214, 8
      %s216 = scalar_lea.vmem %s0, %s215
      %p217 = pneg %p37
      %p218 = pneg %p34
      %p219 = scmp.lt.s32.totalorder %s16, 1
      %s220 = scalar_select %p219, %s16, 1
      %s221 = smul.addr %s220, 2
      %s222 = scalar_lea.vmem %s1, %s221
      %p223 = pneg %p63
      %p224 = pneg %p60
      %p225 = pneg %p84
      %p226 = pneg %p81
      %p227 = pneg %p105
      %p228 = pneg %p102
      %p229 = scmp.lt.s32.totalorder %s16, 1
      %s230 = scalar_select %p229, %s16, 1
      %s231 = smul.addr %s230, 32
      %s232 = smul.addr %s231, 8
      %s233 = scalar_lea.vmem %s4, %s232
      %p234 = pneg %p131
      %p235 = pneg %p128
      %p236 = pneg %p157
      %p237 = pneg %p154
      %p238 = scmp.lt.s32.totalorder %s16, 1
      %s239 = scalar_select %p238, %s16, 1
      %s240 = smul.addr %s239, 32
      %s241 = smul.addr %s240, 8
      %s242 = scalar_lea.vmem %s5, %s241
      %p243 = scmp.lt.s32.totalorder %s16, 1
      %s244 = scalar_select %p243, %s16, 1
      %s245 = smul.addr %s244, 32
      %s246 = smul.addr %s245, 8
      %s247 = scalar_lea.vmem %s0, %s246
      %p248 = scmp.lt.s32.totalorder %s16, 1
      %s249 = scalar_select %p248, %s16, 1
      %s250 = smul.addr %s249, 2
      %s251 = scalar_lea.vmem %s1, %s250
      %p252 = scmp.lt.s32.totalorder %s16, 1
      %s253 = scalar_select %p252, %s16, 1
      %s254 = smul.addr %s253, 32
      %s255 = smul.addr %s254, 8
      %s256 = scalar_lea.vmem %s4, %s255
      %p257 = scmp.lt.s32.totalorder %s16, 1
      %s258 = scalar_select %p257, %s16, 1
      %s259 = smul.addr %s258, 32
      %s260 = smul.addr %s259, 8
      %s261 = scalar_lea.vmem %s5, %s260
      %v262 = vld [vmem:[%s247] sm:$0xff]
      %v263 = vld [vmem:[%s247 + $0x8] sm:$0xff]
      %v264 = vld [vmem:[%s247 + $0x10] sm:$0xff]
      %v265 = vld [vmem:[%s247 + $0x18] sm:$0xff]
      %v266 = vld [vmem:[%s247 + $0x20] sm:$0xff]
      %v267 = vld [vmem:[%s247 + $0x28] sm:$0xff]
      %v268 = vld [vmem:[%s247 + $0x30] sm:$0xff]
      %v269 = vld [vmem:[%s247 + $0x38] sm:$0xff]
      %v270 = vld [vmem:[%s247 + $0x40] sm:$0xff]
      %v271 = vld [vmem:[%s247 + $0x48] sm:$0xff]
      %v272 = vld [vmem:[%s247 + $0x50] sm:$0xff]
      %v273 = vld [vmem:[%s247 + $0x58] sm:$0xff]
      %v274 = vld [vmem:[%s247 + $0x60] sm:$0xff]
      %v275 = vld [vmem:[%s247 + $0x68] sm:$0xff]
      %v276 = vld [vmem:[%s247 + $0x70] sm:$0xff]
      %v277 = vld [vmem:[%s247 + $0x78] sm:$0xff]
      %v278 = vld [vmem:[%s247 + $0x80] sm:$0xff]
      %v279 = vld [vmem:[%s247 + $0x88] sm:$0xff]
      %v280 = vld [vmem:[%s247 + $0x90] sm:$0xff]
      %v281 = vld [vmem:[%s247 + $0x98] sm:$0xff]
      %v282 = vld [vmem:[%s247 + $0xa0] sm:$0xff]
      %v283 = vld [vmem:[%s247 + $0xa8] sm:$0xff]
      %v284 = vld [vmem:[%s247 + $0xb0] sm:$0xff]
      %v285 = vld [vmem:[%s247 + $0xb8] sm:$0xff]
      %v286 = vld [vmem:[%s247 + $0xc0] sm:$0xff]
      %v287 = vld [vmem:[%s247 + $0xc8] sm:$0xff]
      %v288 = vld [vmem:[%s247 + $0xd0] sm:$0xff]
      %v289 = vld [vmem:[%s247 + $0xd8] sm:$0xff]
      %v290 = vld [vmem:[%s247 + $0xe0] sm:$0xff]
      %v291 = vld [vmem:[%s247 + $0xe8] sm:$0xff]
      %v292 = vld [vmem:[%s247 + $0xf0] sm:$0xff]
      %v293 = vld [vmem:[%s247 + $0xf8] sm:$0xff]
      %v294 = vld [vmem:[%s251] sm:$0x3]
      %v295 = vld [vmem:[%s2] sm:$0xff]
      %v296 = vld [vmem:[%s2 + $0x8] sm:$0xff]
      %v297 = vld [vmem:[%s2 + $0x10] sm:$0xff]
      %v298 = vld [vmem:[%s2 + $0x18] sm:$0xff]
      %v299 = vld [vmem:[%s2 + $0x20] sm:$0xff]
      %v300 = vld [vmem:[%s2 + $0x28] sm:$0xff]
      %v301 = vld [vmem:[%s2 + $0x30] sm:$0xff]
      %v302 = vld [vmem:[%s2 + $0x38] sm:$0xff]
      %v303 = vld [vmem:[%s2 + $0x40] sm:$0xff]
      %v304 = vld [vmem:[%s2 + $0x48] sm:$0xff]
      %v305 = vld [vmem:[%s2 + $0x50] sm:$0xff]
      %v306 = vld [vmem:[%s2 + $0x58] sm:$0xff]
      %v307 = vld [vmem:[%s2 + $0x60] sm:$0xff]
      %v308 = vld [vmem:[%s2 + $0x68] sm:$0xff]
      %v309 = vld [vmem:[%s2 + $0x70] sm:$0xff]
      %v310 = vld [vmem:[%s2 + $0x78] sm:$0xff]
      %v312 = vlaneseq
      %v313 = vshrl.u32 %v312, 7
      %v314 = vsub.s32 0, %v313
      %v315 = vrot.slane %v294, %v314
      %v316 = vlaneseq
      %v317 = vshrl.u32 %v316, 7
      %v318 = vsub.s32 1, %v317
      %v319 = vrot.slane %v294, %v318
      %323 = vset.pattern.permute.xlu0 0
      %324 = vperm.xlu0 %323, %v295
      %v325 = vpop.permute.xlu0 %324
      %328 = vset.pattern.permute.xlu0 0
      %329 = vperm.xlu0 %328, %v296
      %v330 = vpop.permute.xlu0 %329
      %333 = vset.pattern.permute.xlu0 0
      %334 = vperm.xlu0 %333, %v297
      %v335 = vpop.permute.xlu0 %334
      %338 = vset.pattern.permute.xlu0 0
      %339 = vperm.xlu0 %338, %v298
      %v340 = vpop.permute.xlu0 %339
      %343 = vset.pattern.permute.xlu0 0
      %344 = vperm.xlu0 %343, %v299
      %v345 = vpop.permute.xlu0 %344
      %348 = vset.pattern.permute.xlu0 0
      %349 = vperm.xlu0 %348, %v300
      %v350 = vpop.permute.xlu0 %349
      %353 = vset.pattern.permute.xlu0 0
      %354 = vperm.xlu0 %353, %v301
      %v355 = vpop.permute.xlu0 %354
      %358 = vset.pattern.permute.xlu0 0
      %359 = vperm.xlu0 %358, %v302
      %v360 = vpop.permute.xlu0 %359
      %363 = vset.pattern.permute.xlu0 0
      %364 = vperm.xlu0 %363, %v303
      %v365 = vpop.permute.xlu0 %364
      %368 = vset.pattern.permute.xlu0 0
      %369 = vperm.xlu0 %368, %v304
      %v370 = vpop.permute.xlu0 %369
      %373 = vset.pattern.permute.xlu0 0
      %374 = vperm.xlu0 %373, %v305
      %v375 = vpop.permute.xlu0 %374
      %378 = vset.pattern.permute.xlu0 0
      %379 = vperm.xlu0 %378, %v306
      %v380 = vpop.permute.xlu0 %379
      %383 = vset.pattern.permute.xlu0 0
      %384 = vperm.xlu0 %383, %v307
      %v385 = vpop.permute.xlu0 %384
      %388 = vset.pattern.permute.xlu0 0
      %389 = vperm.xlu0 %388, %v308
      %v390 = vpop.permute.xlu0 %389
      %393 = vset.pattern.permute.xlu0 0
      %394 = vperm.xlu0 %393, %v309
      %v395 = vpop.permute.xlu0 %394
      %398 = vset.pattern.permute.xlu0 0
      %399 = vperm.xlu0 %398, %v310
      %v400 = vpop.permute.xlu0 %399
      %v402 = vmul.f32 %v315, %v325
      %v403 = vmul.f32 %v319, %v325
      %v404 = vmul.f32 %v315, %v330
      %v405 = vmul.f32 %v319, %v330
      %v406 = vmul.f32 %v315, %v335
      %v407 = vmul.f32 %v319, %v335
      %v408 = vmul.f32 %v315, %v340
      %v409 = vmul.f32 %v319, %v340
      %v410 = vmul.f32 %v315, %v345
      %v411 = vmul.f32 %v319, %v345
      %v412 = vmul.f32 %v315, %v350
      %v413 = vmul.f32 %v319, %v350
      %v414 = vmul.f32 %v315, %v355
      %v415 = vmul.f32 %v319, %v355
      %v416 = vmul.f32 %v315, %v360
      %v417 = vmul.f32 %v319, %v360
      %v418 = vmul.f32 %v315, %v365
      %v419 = vmul.f32 %v319, %v365
      %v420 = vmul.f32 %v315, %v370
      %v421 = vmul.f32 %v319, %v370
      %v422 = vmul.f32 %v315, %v375
      %v423 = vmul.f32 %v319, %v375
      %v424 = vmul.f32 %v315, %v380
      %v425 = vmul.f32 %v319, %v380
      %v426 = vmul.f32 %v315, %v385
      %v427 = vmul.f32 %v319, %v385
      %v428 = vmul.f32 %v315, %v390
      %v429 = vmul.f32 %v319, %v390
      %v430 = vmul.f32 %v315, %v395
      %v431 = vmul.f32 %v319, %v395
      %v432 = vmul.f32 %v315, %v400
      %v433 = vmul.f32 %v319, %v400
      %v434 = vadd.f32 %v262, %v402
      %v435 = vadd.f32 %v263, %v403
      %v436 = vadd.f32 %v264, %v404
      %v437 = vadd.f32 %v265, %v405
      %v438 = vadd.f32 %v266, %v406
      %v439 = vadd.f32 %v267, %v407
      %v440 = vadd.f32 %v268, %v408
      %v441 = vadd.f32 %v269, %v409
      %v442 = vadd.f32 %v270, %v410
      %v443 = vadd.f32 %v271, %v411
      %v444 = vadd.f32 %v272, %v412
      %v445 = vadd.f32 %v273, %v413
      %v446 = vadd.f32 %v274, %v414
      %v447 = vadd.f32 %v275, %v415
      %v448 = vadd.f32 %v276, %v416
      %v449 = vadd.f32 %v277, %v417
      %v450 = vadd.f32 %v278, %v418
      %v451 = vadd.f32 %v279, %v419
      %v452 = vadd.f32 %v280, %v420
      %v453 = vadd.f32 %v281, %v421
      %v454 = vadd.f32 %v282, %v422
      %v455 = vadd.f32 %v283, %v423
      %v456 = vadd.f32 %v284, %v424
      %v457 = vadd.f32 %v285, %v425
      %v458 = vadd.f32 %v286, %v426
      %v459 = vadd.f32 %v287, %v427
      %v460 = vadd.f32 %v288, %v428
      %v461 = vadd.f32 %v289, %v429
      %v462 = vadd.f32 %v290, %v430
      %v463 = vadd.f32 %v291, %v431
      %v464 = vadd.f32 %v292, %v432
      %v465 = vadd.f32 %v293, %v433
      %v466 = vld [vmem:[%s3] sm:$0xff]
      %v467 = vld [vmem:[%s3 + $0x8] sm:$0xff]
      %v468 = vld [vmem:[%s3 + $0x10] sm:$0xff]
      %v469 = vld [vmem:[%s3 + $0x18] sm:$0xff]
      %v470 = vld [vmem:[%s3 + $0x20] sm:$0xff]
      %v471 = vld [vmem:[%s3 + $0x28] sm:$0xff]
      %v472 = vld [vmem:[%s3 + $0x30] sm:$0xff]
      %v473 = vld [vmem:[%s3 + $0x38] sm:$0xff]
      %v474 = vld [vmem:[%s3 + $0x40] sm:$0xff]
      %v475 = vld [vmem:[%s3 + $0x48] sm:$0xff]
      %v476 = vld [vmem:[%s3 + $0x50] sm:$0xff]
      %v477 = vld [vmem:[%s3 + $0x58] sm:$0xff]
      %v478 = vld [vmem:[%s3 + $0x60] sm:$0xff]
      %v479 = vld [vmem:[%s3 + $0x68] sm:$0xff]
      %v480 = vld [vmem:[%s3 + $0x70] sm:$0xff]
      %v481 = vld [vmem:[%s3 + $0x78] sm:$0xff]
      %483 = vset.pattern.permute.xlu0 0
      %484 = vperm.xlu0 %483, %v466
      %v485 = vpop.permute.xlu0 %484
      %488 = vset.pattern.permute.xlu0 0
      %489 = vperm.xlu0 %488, %v467
      %v490 = vpop.permute.xlu0 %489
      %493 = vset.pattern.permute.xlu0 0
      %494 = vperm.xlu0 %493, %v468
      %v495 = vpop.permute.xlu0 %494
      %498 = vset.pattern.permute.xlu0 0
      %499 = vperm.xlu0 %498, %v469
      %v500 = vpop.permute.xlu0 %499
      %503 = vset.pattern.permute.xlu0 0
      %504 = vperm.xlu0 %503, %v470
      %v505 = vpop.permute.xlu0 %504
      %508 = vset.pattern.permute.xlu0 0
      %509 = vperm.xlu0 %508, %v471
      %v510 = vpop.permute.xlu0 %509
      %513 = vset.pattern.permute.xlu0 0
      %514 = vperm.xlu0 %513, %v472
      %v515 = vpop.permute.xlu0 %514
      %518 = vset.pattern.permute.xlu0 0
      %519 = vperm.xlu0 %518, %v473
      %v520 = vpop.permute.xlu0 %519
      %523 = vset.pattern.permute.xlu0 0
      %524 = vperm.xlu0 %523, %v474
      %v525 = vpop.permute.xlu0 %524
      %528 = vset.pattern.permute.xlu0 0
      %529 = vperm.xlu0 %528, %v475
      %v530 = vpop.permute.xlu0 %529
      %533 = vset.pattern.permute.xlu0 0
      %534 = vperm.xlu0 %533, %v476
      %v535 = vpop.permute.xlu0 %534
      %538 = vset.pattern.permute.xlu0 0
      %539 = vperm.xlu0 %538, %v477
      %v540 = vpop.permute.xlu0 %539
      %543 = vset.pattern.permute.xlu0 0
      %544 = vperm.xlu0 %543, %v478
      %v545 = vpop.permute.xlu0 %544
      %548 = vset.pattern.permute.xlu0 0
      %549 = vperm.xlu0 %548, %v479
      %v550 = vpop.permute.xlu0 %549
      %553 = vset.pattern.permute.xlu0 0
      %554 = vperm.xlu0 %553, %v480
      %v555 = vpop.permute.xlu0 %554
      %558 = vset.pattern.permute.xlu0 0
      %559 = vperm.xlu0 %558, %v481
      %v560 = vpop.permute.xlu0 %559
      %v562 = vadd.f32 %v434, %v485
      %v563 = vadd.f32 %v435, %v485
      %v564 = vadd.f32 %v436, %v490
      %v565 = vadd.f32 %v437, %v490
      %v566 = vadd.f32 %v438, %v495
      %v567 = vadd.f32 %v439, %v495
      %v568 = vadd.f32 %v440, %v500
      %v569 = vadd.f32 %v441, %v500
      %v570 = vadd.f32 %v442, %v505
      %v571 = vadd.f32 %v443, %v505
      %v572 = vadd.f32 %v444, %v510
      %v573 = vadd.f32 %v445, %v510
      %v574 = vadd.f32 %v446, %v515
      %v575 = vadd.f32 %v447, %v515
      %v576 = vadd.f32 %v448, %v520
      %v577 = vadd.f32 %v449, %v520
      %v578 = vadd.f32 %v450, %v525
      %v579 = vadd.f32 %v451, %v525
      %v580 = vadd.f32 %v452, %v530
      %v581 = vadd.f32 %v453, %v530
      %v582 = vadd.f32 %v454, %v535
      %v583 = vadd.f32 %v455, %v535
      %v584 = vadd.f32 %v456, %v540
      %v585 = vadd.f32 %v457, %v540
      %v586 = vadd.f32 %v458, %v545
      %v587 = vadd.f32 %v459, %v545
      %v588 = vadd.f32 %v460, %v550
      %v589 = vadd.f32 %v461, %v550
      %v590 = vadd.f32 %v462, %v555
      %v591 = vadd.f32 %v463, %v555
      %v592 = vadd.f32 %v464, %v560
      %v593 = vadd.f32 %v465, %v560
      %v594 = vmul.f32 %v562, 0.2
      %v595 = vmul.f32 %v563, 0.2
      %v596 = vmul.f32 %v564, 0.2
      %v597 = vmul.f32 %v565, 0.2
      %v598 = vmul.f32 %v566, 0.2
      %v599 = vmul.f32 %v567, 0.2
      %v600 = vmul.f32 %v568, 0.2
      %v601 = vmul.f32 %v569, 0.2
      %v602 = vmul.f32 %v570, 0.2
      %v603 = vmul.f32 %v571, 0.2
      %v604 = vmul.f32 %v572, 0.2
      %v605 = vmul.f32 %v573, 0.2
      %v606 = vmul.f32 %v574, 0.2
      %v607 = vmul.f32 %v575, 0.2
      %v608 = vmul.f32 %v576, 0.2
      %v609 = vmul.f32 %v577, 0.2
      %v610 = vmul.f32 %v578, 0.2
      %v611 = vmul.f32 %v579, 0.2
      %v612 = vmul.f32 %v580, 0.2
      %v613 = vmul.f32 %v581, 0.2
      %v614 = vmul.f32 %v582, 0.2
      %v615 = vmul.f32 %v583, 0.2
      %v616 = vmul.f32 %v584, 0.2
      %v617 = vmul.f32 %v585, 0.2
      %v618 = vmul.f32 %v586, 0.2
      %v619 = vmul.f32 %v587, 0.2
      %v620 = vmul.f32 %v588, 0.2
      %v621 = vmul.f32 %v589, 0.2
      %v622 = vmul.f32 %v590, 0.2
      %v623 = vmul.f32 %v591, 0.2
      %v624 = vmul.f32 %v592, 0.2
      %v625 = vmul.f32 %v593, 0.2
      %v626 = vmax.f32 %v562, %v594
      %v627 = vmax.f32 %v563, %v595
      %v628 = vmax.f32 %v564, %v596
      %v629 = vmax.f32 %v565, %v597
      %v630 = vmax.f32 %v566, %v598
      %v631 = vmax.f32 %v567, %v599
      %v632 = vmax.f32 %v568, %v600
      %v633 = vmax.f32 %v569, %v601
      %v634 = vmax.f32 %v570, %v602
      %v635 = vmax.f32 %v571, %v603
      %v636 = vmax.f32 %v572, %v604
      %v637 = vmax.f32 %v573, %v605
      %v638 = vmax.f32 %v574, %v606
      %v639 = vmax.f32 %v575, %v607
      %v640 = vmax.f32 %v576, %v608
      %v641 = vmax.f32 %v577, %v609
      %v642 = vmax.f32 %v578, %v610
      %v643 = vmax.f32 %v579, %v611
      %v644 = vmax.f32 %v580, %v612
      %v645 = vmax.f32 %v581, %v613
      %v646 = vmax.f32 %v582, %v614
      %v647 = vmax.f32 %v583, %v615
      %v648 = vmax.f32 %v584, %v616
      %v649 = vmax.f32 %v585, %v617
      %v650 = vmax.f32 %v586, %v618
      %v651 = vmax.f32 %v587, %v619
      %v652 = vmax.f32 %v588, %v620
      %v653 = vmax.f32 %v589, %v621
      %v654 = vmax.f32 %v590, %v622
      %v655 = vmax.f32 %v591, %v623
      %v656 = vmax.f32 %v592, %v624
      %v657 = vmax.f32 %v593, %v625
      %v658 = vadd.f32 %v626, %v627
      %659 = vadd.xlane.f32.xlu0 %v658
      %v660 = vpop.xlane.xlu0 %659
      %v661 = vadd.f32 %v628, %v629
      %662 = vadd.xlane.f32.xlu0 %v661
      %v663 = vpop.xlane.xlu0 %662
      %v664 = vadd.f32 %v630, %v631
      %665 = vadd.xlane.f32.xlu0 %v664
      %v666 = vpop.xlane.xlu0 %665
      %v667 = vadd.f32 %v632, %v633
      %668 = vadd.xlane.f32.xlu0 %v667
      %v669 = vpop.xlane.xlu0 %668
      %v670 = vadd.f32 %v634, %v635
      %671 = vadd.xlane.f32.xlu0 %v670
      %v672 = vpop.xlane.xlu0 %671
      %v673 = vadd.f32 %v636, %v637
      %674 = vadd.xlane.f32.xlu0 %v673
      %v675 = vpop.xlane.xlu0 %674
      %v676 = vadd.f32 %v638, %v639
      %677 = vadd.xlane.f32.xlu0 %v676
      %v678 = vpop.xlane.xlu0 %677
      %v679 = vadd.f32 %v640, %v641
      %680 = vadd.xlane.f32.xlu0 %v679
      %v681 = vpop.xlane.xlu0 %680
      %v682 = vadd.f32 %v642, %v643
      %683 = vadd.xlane.f32.xlu0 %v682
      %v684 = vpop.xlane.xlu0 %683
      %v685 = vadd.f32 %v644, %v645
      %686 = vadd.xlane.f32.xlu0 %v685
      %v687 = vpop.xlane.xlu0 %686
      %v688 = vadd.f32 %v646, %v647
      %689 = vadd.xlane.f32.xlu0 %v688
      %v690 = vpop.xlane.xlu0 %689
      %v691 = vadd.f32 %v648, %v649
      %692 = vadd.xlane.f32.xlu0 %v691
      %v693 = vpop.xlane.xlu0 %692
      %v694 = vadd.f32 %v650, %v651
      %695 = vadd.xlane.f32.xlu0 %v694
      %v696 = vpop.xlane.xlu0 %695
      %v697 = vadd.f32 %v652, %v653
      %698 = vadd.xlane.f32.xlu0 %v697
      %v699 = vpop.xlane.xlu0 %698
      %v700 = vadd.f32 %v654, %v655
      %701 = vadd.xlane.f32.xlu0 %v700
      %v702 = vpop.xlane.xlu0 %701
      %v703 = vadd.f32 %v656, %v657
      %704 = vadd.xlane.f32.xlu0 %v703
      %v705 = vpop.xlane.xlu0 %704
      %v706 = vmul.f32 %v660, 0.00390625
      %v707 = vmul.f32 %v663, 0.00390625
      %v708 = vmul.f32 %v666, 0.00390625
      %v709 = vmul.f32 %v669, 0.00390625
      %v710 = vmul.f32 %v672, 0.00390625
      %v711 = vmul.f32 %v675, 0.00390625
      %v712 = vmul.f32 %v678, 0.00390625
      %v713 = vmul.f32 %v681, 0.00390625
      %v714 = vmul.f32 %v684, 0.00390625
      %v715 = vmul.f32 %v687, 0.00390625
      %v716 = vmul.f32 %v690, 0.00390625
      %v717 = vmul.f32 %v693, 0.00390625
      %v718 = vmul.f32 %v696, 0.00390625
      %v719 = vmul.f32 %v699, 0.00390625
      %v720 = vmul.f32 %v702, 0.00390625
      %v721 = vmul.f32 %v705, 0.00390625
      %v722 = vmul.f32 %v626, %v626
      %v723 = vmul.f32 %v627, %v627
      %v724 = vmul.f32 %v628, %v628
      %v725 = vmul.f32 %v629, %v629
      %v726 = vmul.f32 %v630, %v630
      %v727 = vmul.f32 %v631, %v631
      %v728 = vmul.f32 %v632, %v632
      %v729 = vmul.f32 %v633, %v633
      %v730 = vmul.f32 %v634, %v634
      %v731 = vmul.f32 %v635, %v635
      %v732 = vmul.f32 %v636, %v636
      %v733 = vmul.f32 %v637, %v637
      %v734 = vmul.f32 %v638, %v638
      %v735 = vmul.f32 %v639, %v639
      %v736 = vmul.f32 %v640, %v640
      %v737 = vmul.f32 %v641, %v641
      %v738 = vmul.f32 %v642, %v642
      %v739 = vmul.f32 %v643, %v643
      %v740 = vmul.f32 %v644, %v644
      %v741 = vmul.f32 %v645, %v645
      %v742 = vmul.f32 %v646, %v646
      %v743 = vmul.f32 %v647, %v647
      %v744 = vmul.f32 %v648, %v648
      %v745 = vmul.f32 %v649, %v649
      %v746 = vmul.f32 %v650, %v650
      %v747 = vmul.f32 %v651, %v651
      %v748 = vmul.f32 %v652, %v652
      %v749 = vmul.f32 %v653, %v653
      %v750 = vmul.f32 %v654, %v654
      %v751 = vmul.f32 %v655, %v655
      %v752 = vmul.f32 %v656, %v656
      %v753 = vmul.f32 %v657, %v657
      %v754 = vadd.f32 %v722, %v723
      %755 = vadd.xlane.f32.xlu0 %v754
      %v756 = vpop.xlane.xlu0 %755
      %v757 = vadd.f32 %v724, %v725
      %758 = vadd.xlane.f32.xlu0 %v757
      %v759 = vpop.xlane.xlu0 %758
      %v760 = vadd.f32 %v726, %v727
      %761 = vadd.xlane.f32.xlu0 %v760
      %v762 = vpop.xlane.xlu0 %761
      %v763 = vadd.f32 %v728, %v729
      %764 = vadd.xlane.f32.xlu0 %v763
      %v765 = vpop.xlane.xlu0 %764
      %v766 = vadd.f32 %v730, %v731
      %767 = vadd.xlane.f32.xlu0 %v766
      %v768 = vpop.xlane.xlu0 %767
      %v769 = vadd.f32 %v732, %v733
      %770 = vadd.xlane.f32.xlu0 %v769
      %v771 = vpop.xlane.xlu0 %770
      %v772 = vadd.f32 %v734, %v735
      %773 = vadd.xlane.f32.xlu0 %v772
      %v774 = vpop.xlane.xlu0 %773
      %v775 = vadd.f32 %v736, %v737
      %776 = vadd.xlane.f32.xlu0 %v775
      %v777 = vpop.xlane.xlu0 %776
      %v778 = vadd.f32 %v738, %v739
      %779 = vadd.xlane.f32.xlu0 %v778
      %v780 = vpop.xlane.xlu0 %779
      %v781 = vadd.f32 %v740, %v741
      %782 = vadd.xlane.f32.xlu0 %v781
      %v783 = vpop.xlane.xlu0 %782
      %v784 = vadd.f32 %v742, %v743
      %785 = vadd.xlane.f32.xlu0 %v784
      %v786 = vpop.xlane.xlu0 %785
      %v787 = vadd.f32 %v744, %v745
      %788 = vadd.xlane.f32.xlu0 %v787
      %v789 = vpop.xlane.xlu0 %788
      %v790 = vadd.f32 %v746, %v747
      %791 = vadd.xlane.f32.xlu0 %v790
      %v792 = vpop.xlane.xlu0 %791
      %v793 = vadd.f32 %v748, %v749
      %794 = vadd.xlane.f32.xlu0 %v793
      %v795 = vpop.xlane.xlu0 %794
      %v796 = vadd.f32 %v750, %v751
      %797 = vadd.xlane.f32.xlu0 %v796
      %v798 = vpop.xlane.xlu0 %797
      %v799 = vadd.f32 %v752, %v753
      %800 = vadd.xlane.f32.xlu0 %v799
      %v801 = vpop.xlane.xlu0 %800
      %v802 = vmul.f32 %v756, 0.00390625
      %v803 = vmul.f32 %v759, 0.00390625
      %v804 = vmul.f32 %v762, 0.00390625
      %v805 = vmul.f32 %v765, 0.00390625
      %v806 = vmul.f32 %v768, 0.00390625
      %v807 = vmul.f32 %v771, 0.00390625
      %v808 = vmul.f32 %v774, 0.00390625
      %v809 = vmul.f32 %v777, 0.00390625
      %v810 = vmul.f32 %v780, 0.00390625
      %v811 = vmul.f32 %v783, 0.00390625
      %v812 = vmul.f32 %v786, 0.00390625
      %v813 = vmul.f32 %v789, 0.00390625
      %v814 = vmul.f32 %v792, 0.00390625
      %v815 = vmul.f32 %v795, 0.00390625
      %v816 = vmul.f32 %v798, 0.00390625
      %v817 = vmul.f32 %v801, 0.00390625
      %v818 = vmul.f32 %v706, %v706
      %v819 = vmul.f32 %v707, %v707
      %v820 = vmul.f32 %v708, %v708
      %v821 = vmul.f32 %v709, %v709
      %v822 = vmul.f32 %v710, %v710
      %v823 = vmul.f32 %v711, %v711
      %v824 = vmul.f32 %v712, %v712
      %v825 = vmul.f32 %v713, %v713
      %v826 = vmul.f32 %v714, %v714
      %v827 = vmul.f32 %v715, %v715
      %v828 = vmul.f32 %v716, %v716
      %v829 = vmul.f32 %v717, %v717
      %v830 = vmul.f32 %v718, %v718
      %v831 = vmul.f32 %v719, %v719
      %v832 = vmul.f32 %v720, %v720
      %v833 = vmul.f32 %v721, %v721
      %v834 = vsub.f32 %v802, %v818
      %v835 = vsub.f32 %v803, %v819
      %v836 = vsub.f32 %v804, %v820
      %v837 = vsub.f32 %v805, %v821
      %v838 = vsub.f32 %v806, %v822
      %v839 = vsub.f32 %v807, %v823
      %v840 = vsub.f32 %v808, %v824
      %v841 = vsub.f32 %v809, %v825
      %v842 = vsub.f32 %v810, %v826
      %v843 = vsub.f32 %v811, %v827
      %v844 = vsub.f32 %v812, %v828
      %v845 = vsub.f32 %v813, %v829
      %v846 = vsub.f32 %v814, %v830
      %v847 = vsub.f32 %v815, %v831
      %v848 = vsub.f32 %v816, %v832
      %v849 = vsub.f32 %v817, %v833
      %v850 = vmax.f32 %v834, 0.0
      %v851 = vmax.f32 %v835, 0.0
      %v852 = vmax.f32 %v836, 0.0
      %v853 = vmax.f32 %v837, 0.0
      %v854 = vmax.f32 %v838, 0.0
      %v855 = vmax.f32 %v839, 0.0
      %v856 = vmax.f32 %v840, 0.0
      %v857 = vmax.f32 %v841, 0.0
      %v858 = vmax.f32 %v842, 0.0
      %v859 = vmax.f32 %v843, 0.0
      %v860 = vmax.f32 %v844, 0.0
      %v861 = vmax.f32 %v845, 0.0
      %v862 = vmax.f32 %v846, 0.0
      %v863 = vmax.f32 %v847, 0.0
      %v864 = vmax.f32 %v848, 0.0
      %v865 = vmax.f32 %v849, 0.0
      %v866 = vsub.f32 %v626, %v706
      %v867 = vsub.f32 %v627, %v706
      %v868 = vsub.f32 %v628, %v707
      %v869 = vsub.f32 %v629, %v707
      %v870 = vsub.f32 %v630, %v708
      %v871 = vsub.f32 %v631, %v708
      %v872 = vsub.f32 %v632, %v709
      %v873 = vsub.f32 %v633, %v709
      %v874 = vsub.f32 %v634, %v710
      %v875 = vsub.f32 %v635, %v710
      %v876 = vsub.f32 %v636, %v711
      %v877 = vsub.f32 %v637, %v711
      %v878 = vsub.f32 %v638, %v712
      %v879 = vsub.f32 %v639, %v712
      %v880 = vsub.f32 %v640, %v713
      %v881 = vsub.f32 %v641, %v713
      %v882 = vsub.f32 %v642, %v714
      %v883 = vsub.f32 %v643, %v714
      %v884 = vsub.f32 %v644, %v715
      %v885 = vsub.f32 %v645, %v715
      %v886 = vsub.f32 %v646, %v716
      %v887 = vsub.f32 %v647, %v716
      %v888 = vsub.f32 %v648, %v717
      %v889 = vsub.f32 %v649, %v717
      %v890 = vsub.f32 %v650, %v718
      %v891 = vsub.f32 %v651, %v718
      %v892 = vsub.f32 %v652, %v719
      %v893 = vsub.f32 %v653, %v719
      %v894 = vsub.f32 %v654, %v720
      %v895 = vsub.f32 %v655, %v720
      %v896 = vsub.f32 %v656, %v721
      %v897 = vsub.f32 %v657, %v721
      %v898 = vadd.f32 %v850, 1e-08
      %v899 = vadd.f32 %v851, 1e-08
      %v900 = vadd.f32 %v852, 1e-08
      %v901 = vadd.f32 %v853, 1e-08
      %v902 = vadd.f32 %v854, 1e-08
      %v903 = vadd.f32 %v855, 1e-08
      %v904 = vadd.f32 %v856, 1e-08
      %v905 = vadd.f32 %v857, 1e-08
      %v906 = vadd.f32 %v858, 1e-08
      %v907 = vadd.f32 %v859, 1e-08
      %v908 = vadd.f32 %v860, 1e-08
      %v909 = vadd.f32 %v861, 1e-08
      %v910 = vadd.f32 %v862, 1e-08
      %v911 = vadd.f32 %v863, 1e-08
      %v912 = vadd.f32 %v864, 1e-08
      %v913 = vadd.f32 %v865, 1e-08
      %v914 = vrsqrt.pop %v898
      %v915 = vrsqrt.pop %v899
      %v916 = vrsqrt.pop %v900
      %v917 = vrsqrt.pop %v901
      %v918 = vrsqrt.pop %v902
      %v919 = vrsqrt.pop %v903
      %v920 = vrsqrt.pop %v904
      %v921 = vrsqrt.pop %v905
      %v922 = vrsqrt.pop %v906
      %v923 = vrsqrt.pop %v907
      %v924 = vrsqrt.pop %v908
      %v925 = vrsqrt.pop %v909
      %v926 = vrsqrt.pop %v910
      %v927 = vrsqrt.pop %v911
      %v928 = vrsqrt.pop %v912
      %v929 = vrsqrt.pop %v913
      %v930 = vmul.f32 %v866, %v914
      %v931 = vmul.f32 %v867, %v914
      %v932 = vmul.f32 %v868, %v915
      %v933 = vmul.f32 %v869, %v915
      %v934 = vmul.f32 %v870, %v916
      %v935 = vmul.f32 %v871, %v916
      %v936 = vmul.f32 %v872, %v917
      %v937 = vmul.f32 %v873, %v917
      %v938 = vmul.f32 %v874, %v918
      %v939 = vmul.f32 %v875, %v918
      %v940 = vmul.f32 %v876, %v919
      %v941 = vmul.f32 %v877, %v919
      %v942 = vmul.f32 %v878, %v920
      %v943 = vmul.f32 %v879, %v920
      %v944 = vmul.f32 %v880, %v921
      %v945 = vmul.f32 %v881, %v921
      %v946 = vmul.f32 %v882, %v922
      %v947 = vmul.f32 %v883, %v922
      %v948 = vmul.f32 %v884, %v923
      %v949 = vmul.f32 %v885, %v923
      %v950 = vmul.f32 %v886, %v924
      %v951 = vmul.f32 %v887, %v924
      %v952 = vmul.f32 %v888, %v925
      %v953 = vmul.f32 %v889, %v925
      %v954 = vmul.f32 %v890, %v926
      %v955 = vmul.f32 %v891, %v926
      %v956 = vmul.f32 %v892, %v927
      %v957 = vmul.f32 %v893, %v927
      %v958 = vmul.f32 %v894, %v928
      %v959 = vmul.f32 %v895, %v928
      %v960 = vmul.f32 %v896, %v929
      %v961 = vmul.f32 %v897, %v929
      %v962 = vld [vmem:[%s256] sm:$0xff]
      %v963 = vld [vmem:[%s256 + $0x8] sm:$0xff]
      %v964 = vld [vmem:[%s256 + $0x10] sm:$0xff]
      %v965 = vld [vmem:[%s256 + $0x18] sm:$0xff]
      %v966 = vld [vmem:[%s256 + $0x20] sm:$0xff]
      %v967 = vld [vmem:[%s256 + $0x28] sm:$0xff]
      %v968 = vld [vmem:[%s256 + $0x30] sm:$0xff]
      %v969 = vld [vmem:[%s256 + $0x38] sm:$0xff]
      %v970 = vld [vmem:[%s256 + $0x40] sm:$0xff]
      %v971 = vld [vmem:[%s256 + $0x48] sm:$0xff]
      %v972 = vld [vmem:[%s256 + $0x50] sm:$0xff]
      %v973 = vld [vmem:[%s256 + $0x58] sm:$0xff]
      %v974 = vld [vmem:[%s256 + $0x60] sm:$0xff]
      %v975 = vld [vmem:[%s256 + $0x68] sm:$0xff]
      %v976 = vld [vmem:[%s256 + $0x70] sm:$0xff]
      %v977 = vld [vmem:[%s256 + $0x78] sm:$0xff]
      %v978 = vld [vmem:[%s256 + $0x80] sm:$0xff]
      %v979 = vld [vmem:[%s256 + $0x88] sm:$0xff]
      %v980 = vld [vmem:[%s256 + $0x90] sm:$0xff]
      %v981 = vld [vmem:[%s256 + $0x98] sm:$0xff]
      %v982 = vld [vmem:[%s256 + $0xa0] sm:$0xff]
      %v983 = vld [vmem:[%s256 + $0xa8] sm:$0xff]
      %v984 = vld [vmem:[%s256 + $0xb0] sm:$0xff]
      %v985 = vld [vmem:[%s256 + $0xb8] sm:$0xff]
      %v986 = vld [vmem:[%s256 + $0xc0] sm:$0xff]
      %v987 = vld [vmem:[%s256 + $0xc8] sm:$0xff]
      %v988 = vld [vmem:[%s256 + $0xd0] sm:$0xff]
      %v989 = vld [vmem:[%s256 + $0xd8] sm:$0xff]
      %v990 = vld [vmem:[%s256 + $0xe0] sm:$0xff]
      %v991 = vld [vmem:[%s256 + $0xe8] sm:$0xff]
      %v992 = vld [vmem:[%s256 + $0xf0] sm:$0xff]
      %v993 = vld [vmem:[%s256 + $0xf8] sm:$0xff]
      %v994 = vadd.f32 %v962, 1.0
      %v995 = vadd.f32 %v963, 1.0
      %v996 = vadd.f32 %v964, 1.0
      %v997 = vadd.f32 %v965, 1.0
      %v998 = vadd.f32 %v966, 1.0
      %v999 = vadd.f32 %v967, 1.0
      %v1000 = vadd.f32 %v968, 1.0
      %v1001 = vadd.f32 %v969, 1.0
      %v1002 = vadd.f32 %v970, 1.0
      %v1003 = vadd.f32 %v971, 1.0
      %v1004 = vadd.f32 %v972, 1.0
      %v1005 = vadd.f32 %v973, 1.0
      %v1006 = vadd.f32 %v974, 1.0
      %v1007 = vadd.f32 %v975, 1.0
      %v1008 = vadd.f32 %v976, 1.0
      %v1009 = vadd.f32 %v977, 1.0
      %1011 = vset.pattern.permute.xlu0 0
      %1012 = vperm.xlu0 %1011, %v994
      %v1013 = vpop.permute.xlu0 %1012
      %1016 = vset.pattern.permute.xlu0 0
      %1017 = vperm.xlu0 %1016, %v995
      %v1018 = vpop.permute.xlu0 %1017
      %1021 = vset.pattern.permute.xlu0 0
      %1022 = vperm.xlu0 %1021, %v996
      %v1023 = vpop.permute.xlu0 %1022
      %1026 = vset.pattern.permute.xlu0 0
      %1027 = vperm.xlu0 %1026, %v997
      %v1028 = vpop.permute.xlu0 %1027
      %1031 = vset.pattern.permute.xlu0 0
      %1032 = vperm.xlu0 %1031, %v998
      %v1033 = vpop.permute.xlu0 %1032
      %1036 = vset.pattern.permute.xlu0 0
      %1037 = vperm.xlu0 %1036, %v999
      %v1038 = vpop.permute.xlu0 %1037
      %1041 = vset.pattern.permute.xlu0 0
      %1042 = vperm.xlu0 %1041, %v1000
      %v1043 = vpop.permute.xlu0 %1042
      %1046 = vset.pattern.permute.xlu0 0
      %1047 = vperm.xlu0 %1046, %v1001
      %v1048 = vpop.permute.xlu0 %1047
      %1051 = vset.pattern.permute.xlu0 0
      %1052 = vperm.xlu0 %1051, %v1002
      %v1053 = vpop.permute.xlu0 %1052
      %1056 = vset.pattern.permute.xlu0 0
      %1057 = vperm.xlu0 %1056, %v1003
      %v1058 = vpop.permute.xlu0 %1057
      %1061 = vset.pattern.permute.xlu0 0
      %1062 = vperm.xlu0 %1061, %v1004
      %v1063 = vpop.permute.xlu0 %1062
      %1066 = vset.pattern.permute.xlu0 0
      %1067 = vperm.xlu0 %1066, %v1005
      %v1068 = vpop.permute.xlu0 %1067
      %1071 = vset.pattern.permute.xlu0 0
      %1072 = vperm.xlu0 %1071, %v1006
      %v1073 = vpop.permute.xlu0 %1072
      %1076 = vset.pattern.permute.xlu0 0
      %1077 = vperm.xlu0 %1076, %v1007
      %v1078 = vpop.permute.xlu0 %1077
      %1081 = vset.pattern.permute.xlu0 0
      %1082 = vperm.xlu0 %1081, %v1008
      %v1083 = vpop.permute.xlu0 %1082
      %1086 = vset.pattern.permute.xlu0 0
      %1087 = vperm.xlu0 %1086, %v1009
      %v1088 = vpop.permute.xlu0 %1087
      %v1090 = vmul.f32 %v930, %v1013
      %v1091 = vmul.f32 %v931, %v1013
      %v1092 = vmul.f32 %v932, %v1018
      %v1093 = vmul.f32 %v933, %v1018
      %v1094 = vmul.f32 %v934, %v1023
      %v1095 = vmul.f32 %v935, %v1023
      %v1096 = vmul.f32 %v936, %v1028
      %v1097 = vmul.f32 %v937, %v1028
      %v1098 = vmul.f32 %v938, %v1033
      %v1099 = vmul.f32 %v939, %v1033
      %v1100 = vmul.f32 %v940, %v1038
      %v1101 = vmul.f32 %v941, %v1038
      %v1102 = vmul.f32 %v942, %v1043
      %v1103 = vmul.f32 %v943, %v1043
      %v1104 = vmul.f32 %v944, %v1048
      %v1105 = vmul.f32 %v945, %v1048
      %v1106 = vmul.f32 %v946, %v1053
      %v1107 = vmul.f32 %v947, %v1053
      %v1108 = vmul.f32 %v948, %v1058
      %v1109 = vmul.f32 %v949, %v1058
      %v1110 = vmul.f32 %v950, %v1063
      %v1111 = vmul.f32 %v951, %v1063
      %v1112 = vmul.f32 %v952, %v1068
      %v1113 = vmul.f32 %v953, %v1068
      %v1114 = vmul.f32 %v954, %v1073
      %v1115 = vmul.f32 %v955, %v1073
      %v1116 = vmul.f32 %v956, %v1078
      %v1117 = vmul.f32 %v957, %v1078
      %v1118 = vmul.f32 %v958, %v1083
      %v1119 = vmul.f32 %v959, %v1083
      %v1120 = vmul.f32 %v960, %v1088
      %v1121 = vmul.f32 %v961, %v1088
      %1123 = vset.pattern.permute.xlu0 0
      %1124 = vperm.xlu0 %1123, %v978
      %v1125 = vpop.permute.xlu0 %1124
      %1128 = vset.pattern.permute.xlu0 0
      %1129 = vperm.xlu0 %1128, %v979
      %v1130 = vpop.permute.xlu0 %1129
      %1133 = vset.pattern.permute.xlu0 0
      %1134 = vperm.xlu0 %1133, %v980
      %v1135 = vpop.permute.xlu0 %1134
      %1138 = vset.pattern.permute.xlu0 0
      %1139 = vperm.xlu0 %1138, %v981
      %v1140 = vpop.permute.xlu0 %1139
      %1143 = vset.pattern.permute.xlu0 0
      %1144 = vperm.xlu0 %1143, %v982
      %v1145 = vpop.permute.xlu0 %1144
      %1148 = vset.pattern.permute.xlu0 0
      %1149 = vperm.xlu0 %1148, %v983
      %v1150 = vpop.permute.xlu0 %1149
      %1153 = vset.pattern.permute.xlu0 0
      %1154 = vperm.xlu0 %1153, %v984
      %v1155 = vpop.permute.xlu0 %1154
      %1158 = vset.pattern.permute.xlu0 0
      %1159 = vperm.xlu0 %1158, %v985
      %v1160 = vpop.permute.xlu0 %1159
      %1163 = vset.pattern.permute.xlu0 0
      %1164 = vperm.xlu0 %1163, %v986
      %v1165 = vpop.permute.xlu0 %1164
      %1168 = vset.pattern.permute.xlu0 0
      %1169 = vperm.xlu0 %1168, %v987
      %v1170 = vpop.permute.xlu0 %1169
      %1173 = vset.pattern.permute.xlu0 0
      %1174 = vperm.xlu0 %1173, %v988
      %v1175 = vpop.permute.xlu0 %1174
      %1178 = vset.pattern.permute.xlu0 0
      %1179 = vperm.xlu0 %1178, %v989
      %v1180 = vpop.permute.xlu0 %1179
      %1183 = vset.pattern.permute.xlu0 0
      %1184 = vperm.xlu0 %1183, %v990
      %v1185 = vpop.permute.xlu0 %1184
      %1188 = vset.pattern.permute.xlu0 0
      %1189 = vperm.xlu0 %1188, %v991
      %v1190 = vpop.permute.xlu0 %1189
      %1193 = vset.pattern.permute.xlu0 0
      %1194 = vperm.xlu0 %1193, %v992
      %v1195 = vpop.permute.xlu0 %1194
      %1198 = vset.pattern.permute.xlu0 0
      %1199 = vperm.xlu0 %1198, %v993
      %v1200 = vpop.permute.xlu0 %1199
      %v1202 = vadd.f32 %v1090, %v1125
      %v1203 = vadd.f32 %v1091, %v1125
      %v1204 = vadd.f32 %v1092, %v1130
      %v1205 = vadd.f32 %v1093, %v1130
      %v1206 = vadd.f32 %v1094, %v1135
      %v1207 = vadd.f32 %v1095, %v1135
      %v1208 = vadd.f32 %v1096, %v1140
      %v1209 = vadd.f32 %v1097, %v1140
      %v1210 = vadd.f32 %v1098, %v1145
      %v1211 = vadd.f32 %v1099, %v1145
      %v1212 = vadd.f32 %v1100, %v1150
      %v1213 = vadd.f32 %v1101, %v1150
      %v1214 = vadd.f32 %v1102, %v1155
      %v1215 = vadd.f32 %v1103, %v1155
      %v1216 = vadd.f32 %v1104, %v1160
      %v1217 = vadd.f32 %v1105, %v1160
      %v1218 = vadd.f32 %v1106, %v1165
      %v1219 = vadd.f32 %v1107, %v1165
      %v1220 = vadd.f32 %v1108, %v1170
      %v1221 = vadd.f32 %v1109, %v1170
      %v1222 = vadd.f32 %v1110, %v1175
      %v1223 = vadd.f32 %v1111, %v1175
      %v1224 = vadd.f32 %v1112, %v1180
      %v1225 = vadd.f32 %v1113, %v1180
      %v1226 = vadd.f32 %v1114, %v1185
      %v1227 = vadd.f32 %v1115, %v1185
      %v1228 = vadd.f32 %v1116, %v1190
      %v1229 = vadd.f32 %v1117, %v1190
      %v1230 = vadd.f32 %v1118, %v1195
      %v1231 = vadd.f32 %v1119, %v1195
      %v1232 = vadd.f32 %v1120, %v1200
      %v1233 = vadd.f32 %v1121, %v1200
      %1234 = vst [vmem:[%s261] sm:$0xff] %v1202
      %1235 = vst [vmem:[%s261 + $0x8] sm:$0xff] %v1203
      %1236 = vst [vmem:[%s261 + $0x10] sm:$0xff] %v1204
      %1237 = vst [vmem:[%s261 + $0x18] sm:$0xff] %v1205
      %1238 = vst [vmem:[%s261 + $0x20] sm:$0xff] %v1206
      %1239 = vst [vmem:[%s261 + $0x28] sm:$0xff] %v1207
      %1240 = vst [vmem:[%s261 + $0x30] sm:$0xff] %v1208
      %1241 = vst [vmem:[%s261 + $0x38] sm:$0xff] %v1209
      %1242 = vst [vmem:[%s261 + $0x40] sm:$0xff] %v1210
      %1243 = vst [vmem:[%s261 + $0x48] sm:$0xff] %v1211
      %1244 = vst [vmem:[%s261 + $0x50] sm:$0xff] %v1212
      %1245 = vst [vmem:[%s261 + $0x58] sm:$0xff] %v1213
      %1246 = vst [vmem:[%s261 + $0x60] sm:$0xff] %v1214
      %1247 = vst [vmem:[%s261 + $0x68] sm:$0xff] %v1215
      %1248 = vst [vmem:[%s261 + $0x70] sm:$0xff] %v1216
      %1249 = vst [vmem:[%s261 + $0x78] sm:$0xff] %v1217
      %1250 = vst [vmem:[%s261 + $0x80] sm:$0xff] %v1218
      %1251 = vst [vmem:[%s261 + $0x88] sm:$0xff] %v1219
      %1252 = vst [vmem:[%s261 + $0x90] sm:$0xff] %v1220
      %1253 = vst [vmem:[%s261 + $0x98] sm:$0xff] %v1221
      %1254 = vst [vmem:[%s261 + $0xa0] sm:$0xff] %v1222
      %1255 = vst [vmem:[%s261 + $0xa8] sm:$0xff] %v1223
      %1256 = vst [vmem:[%s261 + $0xb0] sm:$0xff] %v1224
      %1257 = vst [vmem:[%s261 + $0xb8] sm:$0xff] %v1225
      %1258 = vst [vmem:[%s261 + $0xc0] sm:$0xff] %v1226
      %1259 = vst [vmem:[%s261 + $0xc8] sm:$0xff] %v1227
      %1260 = vst [vmem:[%s261 + $0xd0] sm:$0xff] %v1228
      %1261 = vst [vmem:[%s261 + $0xd8] sm:$0xff] %v1229
      %1262 = vst [vmem:[%s261 + $0xe0] sm:$0xff] %v1230
      %1263 = vst [vmem:[%s261 + $0xe8] sm:$0xff] %v1231
      %1264 = vst [vmem:[%s261 + $0xf0] sm:$0xff] %v1232
      %1265 = vst [vmem:[%s261 + $0xf8] sm:$0xff] %v1233
      %p1266 = scmp.lt.s32.totalorder %s16, 1
      %s1267 = scalar_select %p1266, %s16, 1
      %s1268 = smul.addr %s1267, 32
      %s1269 = smul.addr %s1268, 8
      %s1270 = scalar_lea.vmem %s5, %s1269
      // Predicated region
      $region41: #{layer_epilogue.1} parent=39 // pred_check
        %p1271 = pneg %p154
      $region42: #{layer_epilogue.1} parent=39 // pred_check_branch
        %1273 = sbr.rel (%p1271) target = $region44
      $region43: #{layer_epilogue.1} parent=39 // pred_region
        _
      $region44: #{layer_epilogue.1} parent=39 // pred_fallthru
        _
    $region40: #{layer_epilogue.1} parent=5 // pred_fallthru
      _
    %p1274 = scmp.le.s32.totalorder 2, %s11
    // Predicated region
    $region45: #{layer_epilogue.1} parent=5 // pred_check
      %p1275 = pneg %p1274
    $region46: #{layer_epilogue.1} parent=5 // pred_check_branch
      %1277 = sbr.rel (%p1275) target = $region48
    $region47: #{layer_epilogue.1} parent=5 // pred_region
      %s1278 = ssub.s32 %s11, 2
      // Predicated region
      $region49: #{layer_epilogue.1} parent=47 // pred_check
        %p1279 = pneg %p160
      $region50: #{layer_epilogue.1} parent=47 // pred_check_branch
        %1281 = sbr.rel (%p1279) target = $region52
      $region51: #{layer_epilogue.1} parent=47 // pred_region
        %p1282 = scmp.lt.s32.totalorder %s17, 1
        %s1283 = scalar_select %p1282, %s17, 1
        %s1284 = smul.addr %s1283, 32
        %s1285 = smul.addr %s1284, 8
        %s1286 = scalar_lea.vmem %s5, %s1285
      $region52: #{layer_epilogue.1} parent=47 // pred_fallthru
        _
    $region48: #{layer_epilogue.1} parent=5 // pred_fallthru
      _
  $region6: #{layer_epilogue.1} parent=0 // loop_footer
    %s15 = sadd.s32 1, %s11
  $region7: #{layer_epilogue.1} parent=0 // loop_footer_branch
    %10 = sbr.rel target = $region3
  $region8: #{layer_epilogue.1} parent=0 // loop_exit
    _

</llo_original>
